<compile_context>
chip_gen: v5e
topology: v5e:2x2
jax: 0.10.0
libtpu: 0.0.40
codegen_flags: <defaults>
</compile_context>

<pallas_src>
import functools

import jax
import jax.numpy as jnp
from jax.experimental import pallas as pl
from jax.experimental.pallas import tpu as pltpu


def _round_up(x, m):
    return ((x + m - 1) // m) * m


# ---------------------------------------------------------------------------
# Kernels
# ---------------------------------------------------------------------------
def _sage_gcn_fold_kernel(nb_ref, src_ref, w_agg_ref, w_self_ref, out_ref):
    # nb_ref:     (tn, K*D)  native dtype (f32/bf16), flattened neighbor tile
    # src_ref:    (tn, D)    native dtype, source-node tile
    # w_agg_ref:  (K*D, H)   bf16, pre-tiled aggregator weight (mean folded in)
    # w_self_ref: (D, H)     bf16, self weight
    # out_ref:    (tn, H)    bf16 (f32 accumulation inside)
    nb = nb_ref[...].astype(jnp.bfloat16)        # cast in-kernel: no HBM copy
    src = src_ref[...].astype(jnp.bfloat16)
    neighbor_hidden = jnp.dot(nb, w_agg_ref[...],
                              preferred_element_type=jnp.float32)
    self_hidden = jnp.dot(src, w_self_ref[...],
                          preferred_element_type=jnp.float32)
    out_ref[...] = jnp.maximum(neighbor_hidden + self_hidden,
                               0.0).astype(out_ref.dtype)      # F.relu


def _sage_gcn_mean_kernel(nb_ref, src_ref, w_agg_ref, w_self_ref, out_ref):
    # Fallback path (v5e + large H): compute the neighbor mean in-kernel so the
    # aggregator matmul stays D-deep instead of K*D-deep.
    # nb_ref: (tn, K, D) native dtype; w_agg_ref: (D, H) bf16.
    nb_mean = jnp.mean(nb_ref[...].astype(jnp.float32),
                       axis=1).astype(jnp.bfloat16)
    src = src_ref[...].astype(jnp.bfloat16)
    neighbor_hidden = jnp.dot(nb_mean, w_agg_ref[...],
                              preferred_element_type=jnp.float32)
    self_hidden = jnp.dot(src, w_self_ref[...],
                          preferred_element_type=jnp.float32)
    out_ref[...] = jnp.maximum(neighbor_hidden + self_hidden,
                               0.0).astype(out_ref.dtype)


# ---------------------------------------------------------------------------
# Wrapper
# ---------------------------------------------------------------------------
def _default_fold_mean(hidden_dim):
    # Folding the mean into the weight multiplies neighbor-path MXU FLOPs by K.
    # v5e's bf16 ridge (~240 FLOP/B) is low enough that large H flips the
    # folded form MXU-bound there; v6e/v7x stay memory-bound.
    try:
        kind = jax.devices()[0].device_kind.lower()
    except Exception:  # pragma: no cover
        kind = ""
    is_v5e = ("v5e" in kind) or ("v5 lite" in kind) or ("v5litepod" in kind)
    if is_v5e and hidden_dim >= 256:
        return False
    return True


@functools.partial(jax.jit, static_argnames=("tile_n", "fold_mean", "out_dtype"))
def sage_gcn_forward(src, neighbors, w_agg, w_self, *,
                     tile_n=None, fold_mean=None, out_dtype=jnp.bfloat16):
    N, D = src.shape
    _, K, D2 = neighbors.shape
    assert D2 == D
    H = w_agg.shape[1]
    KD = K * D

    if fold_mean is None:
        fold_mean = _default_fold_mean(H)

    in_bytes = jnp.dtype(neighbors.dtype).itemsize
    src_bytes = jnp.dtype(src.dtype).itemsize
    out_bytes = jnp.dtype(out_dtype).itemsize

    # --- tile size: as large as a conservative VMEM budget allows, but keep
    # >= min(8, cdiv(N,8)) grid programs so the pipeline (and v7x's 2 TCs via
    # the "parallel" axis) always have work to split. -------------------------
    per_row = (2 * KD * in_bytes        # neighbor tile, double-buffered
               + 2 * D * src_bytes      # src tile, double-buffered
               + 2 * H * out_bytes      # output tile, double-buffered
               + (KD + D) * 2           # in-kernel bf16 casts of the inputs
               + 2 * H * 4)             # f32 dot results before the relu/cast
    vmem_budget = 24 * 1024 * 1024      # sized against v7x's 64 MiB physical
    if tile_n is None:
        tile_n = 2048                   # big default; clamped below
    tile_cap = max(8, (vmem_budget // per_row) // 8 * 8)
    tile_n = max(8, min(_round_up(tile_n, 8), tile_cap))
    target_programs = min(8, pl.cdiv(N, 8))
    tile_for_progs = _round_up(pl.cdiv(N, target_programs), 8)
    tile_n = max(8, min(tile_n, tile_for_progs))
    grid = (pl.cdiv(N, tile_n),)        # ragged last tile; no N-padding copies

    # Weights are tiny: pre-process / cast them in the wrapper, keep resident.
    w_self_b = w_self.astype(jnp.bfloat16)
    if fold_mean:
        # Fold the neighbor mean into a pre-tiled weight: (K*D, H) scaled 1/K.
        w_agg_k = (jnp.tile(w_agg, (K, 1)) * (1.0 / K)).astype(jnp.bfloat16)
        nb_in = neighbors.reshape(N, KD)          # free row-major bitcast
        nb_spec = pl.BlockSpec((tile_n, KD), lambda i: (i, 0))
        w_agg_spec = pl.BlockSpec((KD, H), lambda i: (0, 0))
        kernel = _sage_gcn_fold_kernel
    else:
        w_agg_k = w_agg.astype(jnp.bfloat16)
        nb_in = neighbors
        nb_spec = pl.BlockSpec((tile_n, K, D), lambda i: (i, 0, 0))
        w_agg_spec = pl.BlockSpec((D, H), lambda i: (0, 0))
        kernel = _sage_gcn_mean_kernel

    # Request well below v7x's 64 MiB physical VMEM.
    vmem_limit = int(min(48 * 1024 * 1024,
                         max(16 * 1024 * 1024, 2 * per_row * tile_n)))

    out = pl.pallas_call(
        kernel,
        out_shape=jax.ShapeDtypeStruct((N, H), out_dtype),
        grid_spec=pltpu.PrefetchScalarGridSpec(
            num_scalar_prefetch=0,
            grid=grid,
            in_specs=[
                nb_spec,                                        # neighbors
                pl.BlockSpec((tile_n, D), lambda i: (i, 0)),    # src
                w_agg_spec,                                     # W_agg (resident)
                pl.BlockSpec((D, H), lambda i: (0, 0)),         # W_self (resident)
            ],
            out_specs=pl.BlockSpec((tile_n, H), lambda i: (i, 0)),
        ),
        compiler_params=pltpu.CompilerParams(
            dimension_semantics=("parallel",),
            vmem_limit_bytes=vmem_limit),
    )(nb_in, src, w_agg_k, w_self_b)
    return out


# ---------------------------------------------------------------------------
# Init + references
# ---------------------------------------------------------------------------
def kaiming_uniform(key, shape):
    # kaiming_uniform_ on a (fan_in, fan_out) matrix: bound = sqrt(6 / fan_in)
    fan_in = shape[0]
    bound = jnp.sqrt(6.0 / fan_in)
    return jax.random.uniform(key, shape, jnp.float32, -bound, bound)


def reference_forward_f32(src, neighbors, w_agg, w_self):
    # Exact module semantics in f32.
    aggr = jnp.mean(neighbors, axis=1)
    return jax.nn.relu(src @ w_self + aggr @ w_agg)


def reference_forward_kernel_math(src, neighbors, w_agg, w_self):
    # Mirrors the folded-mean kernel arithmetic: bf16 operands, f32 acc, bf16 out.
    N, K, D = neighbors.shape
    nb = neighbors.reshape(N, K * D).astype(jnp.bfloat16)
    wr = (jnp.tile(w_agg, (K, 1)) * (1.0 / K)).astype(jnp.bfloat16)
    nh = jnp.dot(nb, wr, preferred_element_type=jnp.float32)
    sh = jnp.dot(src.astype(jnp.bfloat16), w_self.astype(jnp.bfloat16),
                 preferred_element_type=jnp.float32)
    return jnp.maximum(nh + sh, 0.0).astype(jnp.bfloat16).astype(jnp.float32)


if __name__ == "__main__":
    # Small, module-consistent shapes; N not a multiple of the tile to
    # exercise the ragged last-tile path.
    N, K, D, H = 500, 8, 32, 64   # nodes, neighbors/node, input_dim, hidden_dim

    key = jax.random.PRNGKey(0)
    k_src, k_nb, k_wa, k_ws = jax.random.split(key, 4)

    src = jax.random.normal(k_src, (N, D), jnp.float32)
    neighbors = jax.random.normal(k_nb, (N, K, D), jnp.float32)
    w_agg = kaiming_uniform(k_wa, (D, H))    # NeighborAggregator.weight
    w_self = kaiming_uniform(k_ws, (D, H))   # SageGCN.weight

    ref_f32 = reference_forward_f32(src, neighbors, w_agg, w_self)

    # Primary (folded-mean, bf16-output) path.
    out = sage_gcn_forward(src, neighbors, w_agg, w_self)
    out = jax.block_until_ready(out)
    assert out.shape == (N, H)
    out_f32 = out.astype(jnp.float32)

    # Tight check against a reference doing the same bf16 arithmetic.
    ref_tight = reference_forward_kernel_math(src, neighbors, w_agg, w_self)
    assert jnp.allclose(out_f32, ref_tight, atol=2e-2, rtol=2e-2)
    # Loose check against exact f32 module semantics (bf16 cast error only).
    assert jnp.allclose(out_f32, ref_f32, atol=1e-1, rtol=1e-1)

    # In-kernel-mean fallback path (used on v5e at large H) — validate it too.
    out2 = sage_gcn_forward(src, neighbors, w_agg, w_self, fold_mean=False)
    out2 = jax.block_until_ready(out2)
    assert out2.shape == (N, H)
    assert jnp.allclose(out2.astype(jnp.float32), ref_f32, atol=1e-1, rtol=1e-1)

    print("KERNEL_OK")
</pallas_src>

<mosaic_0001>
module attributes {stable_mosaic.version = 11 : i64} {
  func.func @_sage_gcn_fold_kernel(%arg0: i32, %arg1: memref<64x256xf32, #tpu.memory_space<vmem>>, %arg2: memref<64x32xf32, #tpu.memory_space<vmem>>, %arg3: memref<256x64xbf16, #tpu.memory_space<vmem>>, %arg4: memref<32x64xbf16, #tpu.memory_space<vmem>>, %arg5: memref<64x64xbf16, #tpu.memory_space<vmem>>) attributes {dimension_semantics = [#tpu.dimension_semantics<parallel>], iteration_bounds = array<i64: 8>, scalar_prefetch = 0 : i64, scratch_operands = 0 : i64, tpu.core_type = #tpu.core_type<tc>, window_params = [{transform_indices = @transform_0, window_bounds = array<i64: 64, 256>}, {transform_indices = @transform_1, window_bounds = array<i64: 64, 32>}, {pipeline_mode = #tpu.pipeline_mode<synchronous>, transform_indices = @transform_2, window_bounds = array<i64: 256, 64>}, {pipeline_mode = #tpu.pipeline_mode<synchronous>, transform_indices = @transform_3, window_bounds = array<i64: 32, 64>}, {transform_indices = @transform_4, window_bounds = array<i64: 64, 64>}]} {
    %c0 = arith.constant 0 : index
    %c0_0 = arith.constant 0 : index
    %0 = vector.load %arg1[%c0, %c0_0] : memref<64x256xf32, #tpu.memory_space<vmem>>, vector<64x256xf32>
    %1 = arith.truncf %0 : vector<64x256xf32> to vector<64x256xbf16>
    %c0_1 = arith.constant 0 : index
    %c0_2 = arith.constant 0 : index
    %2 = vector.load %arg2[%c0_1, %c0_2] : memref<64x32xf32, #tpu.memory_space<vmem>>, vector<64x32xf32>
    %3 = arith.truncf %2 : vector<64x32xf32> to vector<64x32xbf16>
    %c0_3 = arith.constant 0 : index
    %c0_4 = arith.constant 0 : index
    %4 = vector.load %arg3[%c0_3, %c0_4] : memref<256x64xbf16, #tpu.memory_space<vmem>>, vector<256x64xbf16>
    %cst = arith.constant dense<0.000000e+00> : vector<64x64xf32>
    %5 = tpu.matmul %1, %4, %cst {dimension_numbers = #tpu.dot_dimension_numbers<[1], [0], [0], [1], [0, 0, 1, 1], [], []>} : vector<64x256xbf16>, vector<256x64xbf16>, vector<64x64xf32> -> vector<64x64xf32>
    %c0_5 = arith.constant 0 : index
    %c0_6 = arith.constant 0 : index
    %6 = vector.load %arg4[%c0_5, %c0_6] : memref<32x64xbf16, #tpu.memory_space<vmem>>, vector<32x64xbf16>
    %cst_7 = arith.constant dense<0.000000e+00> : vector<64x64xf32>
    %7 = tpu.matmul %3, %6, %cst_7 {dimension_numbers = #tpu.dot_dimension_numbers<[1], [0], [0], [1], [0, 0, 1, 1], [], []>} : vector<64x32xbf16>, vector<32x64xbf16>, vector<64x64xf32> -> vector<64x64xf32>
    %8 = arith.addf %5, %7 : vector<64x64xf32>
    %cst_8 = arith.constant 0.000000e+00 : f32
    %9 = vector.broadcast %cst_8 : f32 to vector<64x64xf32>
    %10 = arith.maximumf %8, %9 : vector<64x64xf32>
    %11 = arith.truncf %10 : vector<64x64xf32> to vector<64x64xbf16>
    %c0_9 = arith.constant 0 : index
    %c0_10 = arith.constant 0 : index
    %12 = vector.load %arg5[%c0_9, %c0_10] : memref<64x64xbf16, #tpu.memory_space<vmem>>, vector<64x64xbf16>
    tpu.vector_store %arg5[%c0_9, %c0_10], %11 {strides = array<i32>} : memref<64x64xbf16, #tpu.memory_space<vmem>>, vector<64x64xbf16>,
    return
  }
  func.func @transform_0(%arg0: i32) -> (i32, i32) {
    %c0_i32 = arith.constant 0 : i32
    %c0_i32_0 = arith.constant 0 : i32
    return %arg0, %c0_i32 : i32, i32
  }
  func.func @transform_1(%arg0: i32) -> (i32, i32) {
    %c0_i32 = arith.constant 0 : i32
    %c0_i32_0 = arith.constant 0 : i32
    return %arg0, %c0_i32 : i32, i32
  }
  func.func @transform_2(%arg0: i32) -> (i32, i32) {
    %c0_i32 = arith.constant 0 : i32
    %c0_i32_0 = arith.constant 0 : i32
    %c0_i32_1 = arith.constant 0 : i32
    return %c0_i32, %c0_i32_0 : i32, i32
  }
  func.func @transform_3(%arg0: i32) -> (i32, i32) {
    %c0_i32 = arith.constant 0 : i32
    %c0_i32_0 = arith.constant 0 : i32
    %c0_i32_1 = arith.constant 0 : i32
    return %c0_i32, %c0_i32_0 : i32, i32
  }
  func.func @transform_4(%arg0: i32) -> (i32, i32) {
    %c0_i32 = arith.constant 0 : i32
    %c0_i32_0 = arith.constant 0 : i32
    return %arg0, %c0_i32 : i32, i32
  }
}

</mosaic_0001>

<llo_original>
// kernel: sage_gcn_forward.1
$region0: #{sage_gcn_forward.1}
  #allocation0 [shape = 'u32[]', space=smem, size = 0x4, offset = 0x4, fixed_abs, tag = 'smem constant byte address 0x4 - core index']
  #allocation1 [shape = 'u32[72,128]{1,0:T(1,128)}', space=vmem, size = 0x9000, scoped, tag = 'internal scratch']
  %s0 = inlined_call_operand.vmem [shape: f32[500,256], index: 0, kind: input, shape index: {}]
  %s1 = inlined_call_operand.vmem [shape: f32[500,32], index: 1, kind: input, shape index: {}]
  %s2 = inlined_call_operand.vmem [shape: bf16[256,64], index: 2, kind: input, shape index: {}]
  %s3 = inlined_call_operand.vmem [shape: bf16[32,64], index: 3, kind: input, shape index: {}]
  %s4 = inlined_call_operand.vmem [shape: bf16[500,64], index: 4, kind: output, shape index: {}]
  %s5 = sld [smem:[#allocation0]]
  $region93: #{sage_gcn_forward.1} parent=0
    _
  %s7 = ssub.s32 1, %s5
  %s8 = scalar_select 0, %s7, %s5
  $region1: #{sage_gcn_forward.1} parent=0
    #allocation2 [shape = 'u8[32768]{0}', space=vmem, size = 0x8000, scoped, tag = 'output window, operand 0']
    loop: start=0, step=1, limit=10
    $region2: #{sage_gcn_forward.1} parent=1 // loop_pre_header
      _
    $region3: #{sage_gcn_forward.1} parent=1 // loop_header
      %s10 = sphi 0, %s14
      %p11 = scmp.ge.s32.totalorder %s10, 10
      %s20 = sphi 0, %s22
      %s23 = sphi 0, %s20
      %s24 = sphi 0, %s23
      %s40 = sphi 0, %s24
      %s46 = sphi 0, %s48
      %s49 = sphi 0, %s46
      %s50 = sphi 0, %s49
      %s66 = sphi 0, %s50
      %s70 = sphi 0, %s70
      %s72 = sphi 0, %s70
      %s73 = sphi 0, %s72
      %s87 = sphi 0, %s73
      %s91 = sphi 0, %s91
      %s93 = sphi 0, %s91
      %s94 = sphi 0, %s93
      %s108 = sphi 0, %s94
      %s114 = sphi 0, %s116
      %s117 = sphi 0, %s114
      %s118 = sphi 0, %s117
      %s134 = sphi 0, %s118
    $region4: #{sage_gcn_forward.1} parent=1 // loop_header_branch
      %13 = sbr.rel (%p11) target = $region8
    $region5: #{sage_gcn_forward.1} parent=1 // loop_body
      %s15 = ssub.s32 %s10, 1
      %s16 = ssub.s32 %s10, 2
      %s17 = sadd.s32 %s10, 1
      %s18 = ssub.s32 %s10, %s17
      %p19 = scmp.eq.s32.totalorder %s18, 0
      %s21 = sadd.s32 %s20, 1
      %s22 = scalar_select %p19, %s20, %s21
      %p25 = pneg %p19
      %p26 = scmp.eq.s32.totalorder %s10, 7
      %p27 = por %p25, %p26
      %p28 = scmp.ne.s32.totalorder %s20, %s23
      %p29 = scmp.eq.s32.totalorder %s10, 0
      %p30 = por %p28, %p29
      %p31 = scmp.ne.s32.totalorder %s20, %s23
      %p32 = scmp.eq.s32.totalorder %s15, 7
      %p33 = por %p31, %p32
      %p34 = scmp.ne.s32.totalorder %s23, %s24
      %p35 = scmp.eq.s32.totalorder %s15, 0
      %p36 = por %p34, %p35
      %p37 = scmp.ne.s32.totalorder %s23, %s24
      %p38 = scmp.eq.s32.totalorder %s16, 7
      %p39 = por %p37, %p38
      %p41 = scmp.ne.s32.totalorder %s24, %s40
      %p42 = scmp.eq.s32.totalorder %s16, 0
      %p43 = por %p41, %p42
      %s44 = ssub.s32 %s10, %s17
      %p45 = scmp.eq.s32.totalorder %s44, 0
      %s47 = sadd.s32 %s46, 1
      %s48 = scalar_select %p45, %s46, %s47
      %p51 = pneg %p45
      %p52 = scmp.eq.s32.totalorder %s10, 7
      %p53 = por %p51, %p52
      %p54 = scmp.ne.s32.totalorder %s46, %s49
      %p55 = scmp.eq.s32.totalorder %s10, 0
      %p56 = por %p54, %p55
      %p57 = scmp.ne.s32.totalorder %s46, %s49
      %p58 = scmp.eq.s32.totalorder %s15, 7
      %p59 = por %p57, %p58
      %p60 = scmp.ne.s32.totalorder %s49, %s50
      %p61 = scmp.eq.s32.totalorder %s15, 0
      %p62 = por %p60, %p61
      %p63 = scmp.ne.s32.totalorder %s49, %s50
      %p64 = scmp.eq.s32.totalorder %s16, 7
      %p65 = por %p63, %p64
      %p67 = scmp.ne.s32.totalorder %s50, %s66
      %p68 = scmp.eq.s32.totalorder %s16, 0
      %p69 = por %p67, %p68
      %s71 = sadd.s32 %s70, 1
      %p74 = scmp.eq.s32.totalorder %s10, 7
      %p75 = scmp.ne.s32.totalorder %s70, %s72
      %p76 = scmp.eq.s32.totalorder %s10, 0
      %p77 = por %p75, %p76
      %p78 = scmp.ne.s32.totalorder %s70, %s72
      %p79 = scmp.eq.s32.totalorder %s15, 7
      %p80 = por %p78, %p79
      %p81 = scmp.ne.s32.totalorder %s72, %s73
      %p82 = scmp.eq.s32.totalorder %s15, 0
      %p83 = por %p81, %p82
      %p84 = scmp.ne.s32.totalorder %s72, %s73
      %p85 = scmp.eq.s32.totalorder %s16, 7
      %p86 = por %p84, %p85
      %p88 = scmp.ne.s32.totalorder %s73, %s87
      %p89 = scmp.eq.s32.totalorder %s16, 0
      %p90 = por %p88, %p89
      %s92 = sadd.s32 %s91, 1
      %p95 = scmp.eq.s32.totalorder %s10, 7
      %p96 = scmp.ne.s32.totalorder %s91, %s93
      %p97 = scmp.eq.s32.totalorder %s10, 0
      %p98 = por %p96, %p97
      %p99 = scmp.ne.s32.totalorder %s91, %s93
      %p100 = scmp.eq.s32.totalorder %s15, 7
      %p101 = por %p99, %p100
      %p102 = scmp.ne.s32.totalorder %s93, %s94
      %p103 = scmp.eq.s32.totalorder %s15, 0
      %p104 = por %p102, %p103
      %p105 = scmp.ne.s32.totalorder %s93, %s94
      %p106 = scmp.eq.s32.totalorder %s16, 7
      %p107 = por %p105, %p106
      %p109 = scmp.ne.s32.totalorder %s94, %s108
      %p110 = scmp.eq.s32.totalorder %s16, 0
      %p111 = por %p109, %p110
      %s112 = ssub.s32 %s10, %s17
      %p113 = scmp.eq.s32.totalorder %s112, 0
      %s115 = sadd.s32 %s114, 1
      %s116 = scalar_select %p113, %s114, %s115
      %p119 = pneg %p113
      %p120 = scmp.eq.s32.totalorder %s10, 7
      %p121 = por %p119, %p120
      %p122 = scmp.ne.s32.totalorder %s114, %s117
      %p123 = scmp.eq.s32.totalorder %s10, 0
      %p124 = por %p122, %p123
      %p125 = scmp.ne.s32.totalorder %s114, %s117
      %p126 = scmp.eq.s32.totalorder %s15, 7
      %p127 = por %p125, %p126
      %p128 = scmp.ne.s32.totalorder %s117, %s118
      %p129 = scmp.eq.s32.totalorder %s15, 0
      %p130 = por %p128, %p129
      %p131 = scmp.ne.s32.totalorder %s117, %s118
      %p132 = scmp.eq.s32.totalorder %s16, 7
      %p133 = por %p131, %p132
      %p135 = scmp.ne.s32.totalorder %s118, %s134
      %p136 = scmp.eq.s32.totalorder %s16, 0
      %p137 = por %p135, %p136
      %p138 = scmp.le.s32.totalorder 1, %s10
      %p139 = scmp.lt.s32.totalorder %s10, 9
      %p140 = pnand %p138, %p139
      %p141 = pneg %p140
      // Predicated region
      $region9: #{sage_gcn_forward.1} parent=5 // pred_check
        _
      $region10: #{sage_gcn_forward.1} parent=5 // pred_check_branch
        %143 = sbr.rel (%p140) target = $region12
      $region11: #{sage_gcn_forward.1} parent=5 // pred_region
        %s144 = ssub.s32 %s10, 1
        // Predicated region
        $region13: #{sage_gcn_forward.1} parent=11 // pred_check
          %p145 = pneg %p83
        $region14: #{sage_gcn_forward.1} parent=11 // pred_check_branch
          %147 = sbr.rel (%p145) target = $region16
        $region15: #{sage_gcn_forward.1} parent=11 // pred_region
          _
        $region16: #{sage_gcn_forward.1} parent=11 // pred_fallthru
          _
        // Predicated region
        $region17: #{sage_gcn_forward.1} parent=11 // pred_check
          %p148 = pneg %p104
        $region18: #{sage_gcn_forward.1} parent=11 // pred_check_branch
          %150 = sbr.rel (%p148) target = $region20
        $region19: #{sage_gcn_forward.1} parent=11 // pred_region
          _
        $region20: #{sage_gcn_forward.1} parent=11 // pred_fallthru
          _
      $region12: #{sage_gcn_forward.1} parent=5 // pred_fallthru
        _
      %p151 = scmp.lt.s32.totalorder %s10, 8
      // Predicated region
      $region21: #{sage_gcn_forward.1} parent=5 // pred_check
        %p152 = pneg %p151
      $region22: #{sage_gcn_forward.1} parent=5 // pred_check_branch
        %154 = sbr.rel (%p152) target = $region24
      $region23: #{sage_gcn_forward.1} parent=5 // pred_region
        // Predicated region
        $region25: #{sage_gcn_forward.1} parent=23 // pred_check
          %p155 = pneg %p30
        $region26: #{sage_gcn_forward.1} parent=23 // pred_check_branch
          %157 = sbr.rel (%p155) target = $region28
        $region27: #{sage_gcn_forward.1} parent=23 // pred_region
          %s158 = smul.u32 8, %s10
          %s159 = ssub.s32 63, %s158
          %p160 = scmp.lt.s32.totalorder %s159, 8
          %s161 = scalar_select %p160, %s159, 8
          %s162 = smul.u32 8, %s161
          %s163 = smul.u32 %s162, 2
          %p164 = scmp.lt.s32.totalorder %s158, 62
          %s165 = scalar_select %p164, %s158, 62
          %s166 = smul.addr %s165, 2
          %s167 = smul.addr %s166, 8
          %s168 = scalar_lea.vmem %s0, %s167
          %s169 = smul.u32 8, %s10
          %s170 = ssub.s32 63, %s169
          %p171 = scmp.lt.s32.totalorder %s170, 8
          %s172 = scalar_select %p171, %s170, 8
          %s173 = smul.u32 8, %s172
          %s174 = smul.u32 %s173, 2
        $region28: #{sage_gcn_forward.1} parent=23 // pred_fallthru
          _
        // Predicated region
        $region29: #{sage_gcn_forward.1} parent=23 // pred_check
          %p175 = pneg %p56
        $region30: #{sage_gcn_forward.1} parent=23 // pred_check_branch
          %177 = sbr.rel (%p175) target = $region32
        $region31: #{sage_gcn_forward.1} parent=23 // pred_region
          %s178 = smul.u32 8, %s10
          %s179 = ssub.s32 63, %s178
          %p180 = scmp.lt.s32.totalorder %s179, 8
          %s181 = scalar_select %p180, %s179, 8
          %s182 = smul.u32 8, %s181
          %p183 = scmp.lt.s32.totalorder %s178, 62
          %s184 = scalar_select %p183, %s178, 62
          %s185 = smul.addr %s184, 8
          %s186 = scalar_lea.vmem %s1, %s185
          %s187 = smul.u32 8, %s10
          %s188 = ssub.s32 63, %s187
          %p189 = scmp.lt.s32.totalorder %s188, 8
          %s190 = scalar_select %p189, %s188, 8
          %s191 = smul.u32 8, %s190
        $region32: #{sage_gcn_forward.1} parent=23 // pred_fallthru
          _
      $region24: #{sage_gcn_forward.1} parent=5 // pred_fallthru
        _
      %p192 = scmp.le.s32.totalorder 1, %s10
      %p193 = scmp.lt.s32.totalorder %s10, 9
      %p194 = pnand %p192, %p193
      %p195 = pneg %p194
      // Predicated region
      $region33: #{sage_gcn_forward.1} parent=5 // pred_check
        _
      $region34: #{sage_gcn_forward.1} parent=5 // pred_check_branch
        %197 = sbr.rel (%p194) target = $region36
      $region35: #{sage_gcn_forward.1} parent=5 // pred_region
        %s198 = ssub.s32 %s10, 1
        %s199 = smul.u32 8, %s15
        %s200 = ssub.s32 63, %s199
        %p201 = scmp.lt.s32.totalorder %s200, 8
        %s202 = scalar_select %p201, %s200, 8
        %s203 = smul.u32 8, %s202
        %s204 = smul.u32 %s203, 2
        %p205 = scmp.lt.s32.totalorder %s199, 62
        %s206 = scalar_select %p205, %s199, 62
        %s207 = smul.addr %s206, 2
        %s208 = smul.addr %s207, 8
        %s209 = scalar_lea.vmem %s0, %s208
        %p210 = pneg %p36
        %p211 = pneg %p33
        %s212 = smul.u32 8, %s15
        %s213 = ssub.s32 63, %s212
        %p214 = scmp.lt.s32.totalorder %s213, 8
        %s215 = scalar_select %p214, %s213, 8
        %s216 = smul.u32 8, %s215
        %p217 = scmp.lt.s32.totalorder %s212, 62
        %s218 = scalar_select %p217, %s212, 62
        %s219 = smul.addr %s218, 8
        %s220 = scalar_lea.vmem %s1, %s219
        %p221 = pneg %p62
        %p222 = pneg %p59
        %p223 = pneg %p83
        %p224 = pneg %p80
        %p225 = pneg %p104
        %p226 = pneg %p101
        %p227 = pneg %p130
        %p228 = pneg %p127
        %s229 = sand.u32 %s117, 1
        %s230 = sand.u32 %s117, 1
        %s231 = smul.addr %s230, 32
        %s232 = scalar_lea.vmem [#allocation2], %s231
        %s233 = smul.u32 8, %s15
        %s234 = ssub.s32 63, %s233
        %p235 = scmp.lt.s32.totalorder %s234, 8
        %s236 = scalar_select %p235, %s234, 8
        %s237 = smul.u32 8, %s236
        %s238 = smul.u32 %s237, 2
        %p239 = scmp.lt.s32.totalorder %s233, 62
        %s240 = scalar_select %p239, %s233, 62
        %s241 = smul.addr %s240, 2
        %s242 = smul.addr %s241, 8
        %s243 = scalar_lea.vmem %s0, %s242
        %s244 = smul.u32 8, %s15
        %s245 = ssub.s32 63, %s244
        %p246 = scmp.lt.s32.totalorder %s245, 8
        %s247 = scalar_select %p246, %s245, 8
        %s248 = smul.u32 8, %s247
        %s249 = smul.u32 %s248, 2
        %s250 = smul.u32 8, %s15
        %s251 = ssub.s32 63, %s250
        %p252 = scmp.lt.s32.totalorder %s251, 8
        %s253 = scalar_select %p252, %s251, 8
        %s254 = smul.u32 8, %s253
        %p255 = scmp.lt.s32.totalorder %s250, 62
        %s256 = scalar_select %p255, %s250, 62
        %s257 = smul.addr %s256, 8
        %s258 = scalar_lea.vmem %s1, %s257
        %s259 = smul.u32 8, %s15
        %s260 = ssub.s32 63, %s259
        %p261 = scmp.lt.s32.totalorder %s260, 8
        %s262 = scalar_select %p261, %s260, 8
        %s263 = smul.u32 8, %s262
        %s264 = smul.u32 8, %s15
        %s265 = ssub.s32 63, %s264
        %p266 = scmp.lt.s32.totalorder %s265, 8
        %s267 = scalar_select %p266, %s265, 8
        %s268 = smul.u32 4, %s267
        %v270 = vld [vmem:[%s243] sm:$0xff]
        %v271 = vld [vmem:[%s243 + $0x8] sm:$0xff]
        %v272 = vld [vmem:[%s243 + $0x10] sm:$0xff]
        %v273 = vld [vmem:[%s243 + $0x18] sm:$0xff]
        %v274 = vld [vmem:[%s243 + $0x20] sm:$0xff]
        %v275 = vld [vmem:[%s243 + $0x28] sm:$0xff]
        %v276 = vld [vmem:[%s243 + $0x30] sm:$0xff]
        %v277 = vld [vmem:[%s243 + $0x38] sm:$0xff]
        %v278 = vld [vmem:[%s243 + $0x40] sm:$0xff]
        %v279 = vld [vmem:[%s243 + $0x48] sm:$0xff]
        %v280 = vld [vmem:[%s243 + $0x50] sm:$0xff]
        %v281 = vld [vmem:[%s243 + $0x58] sm:$0xff]
        %v282 = vld [vmem:[%s243 + $0x60] sm:$0xff]
        %v283 = vld [vmem:[%s243 + $0x68] sm:$0xff]
        %v284 = vld [vmem:[%s243 + $0x70] sm:$0xff]
        %v285 = vld [vmem:[%s243 + $0x78] sm:$0xff]
        %v286 = vpack.c.bf16 %v272, %v270
        %v287 = vpack.c.bf16 %v273, %v271
        %v288 = vpack.c.bf16 %v276, %v274
        %v289 = vpack.c.bf16 %v277, %v275
        %v290 = vpack.c.bf16 %v280, %v278
        %v291 = vpack.c.bf16 %v281, %v279
        %v292 = vpack.c.bf16 %v284, %v282
        %v293 = vpack.c.bf16 %v285, %v283
        %v294 = vld [vmem:[%s258] sm:$0xff]
        %v295 = vld [vmem:[%s258 + $0x8] sm:$0xff]
        %v296 = vld [vmem:[%s258 + $0x10] sm:$0xff]
        %v297 = vld [vmem:[%s258 + $0x18] sm:$0xff]
        %v298 = vld [vmem:[%s258 + $0x20] sm:$0xff]
        %v299 = vld [vmem:[%s258 + $0x28] sm:$0xff]
        %v300 = vld [vmem:[%s258 + $0x30] sm:$0xff]
        %v301 = vld [vmem:[%s258 + $0x38] sm:$0xff]
        %v302 = vpack.c.bf16 %v295, %v294
        %v303 = vpack.c.bf16 %v297, %v296
        %v304 = vpack.c.bf16 %v299, %v298
        %v305 = vpack.c.bf16 %v301, %v300
        %v306 = vld [vmem:[%s2] sm:$0xf]
        %v307 = vld [vmem:[%s2 + $0x4] sm:$0xf]
        %v308 = vld [vmem:[%s2 + $0x8] sm:$0xf]
        %v309 = vld [vmem:[%s2 + $0xc] sm:$0xf]
        %v310 = vld [vmem:[%s2 + $0x10] sm:$0xf]
        %v311 = vld [vmem:[%s2 + $0x14] sm:$0xf]
        %v312 = vld [vmem:[%s2 + $0x18] sm:$0xf]
        %v313 = vld [vmem:[%s2 + $0x1c] sm:$0xf]
        %v314 = vld [vmem:[%s2 + $0x20] sm:$0xf]
        %v315 = vld [vmem:[%s2 + $0x24] sm:$0xf]
        %v316 = vld [vmem:[%s2 + $0x28] sm:$0xf]
        %v317 = vld [vmem:[%s2 + $0x2c] sm:$0xf]
        %v318 = vld [vmem:[%s2 + $0x30] sm:$0xf]
        %v319 = vld [vmem:[%s2 + $0x34] sm:$0xf]
        %v320 = vld [vmem:[%s2 + $0x38] sm:$0xf]
        %v321 = vld [vmem:[%s2 + $0x3c] sm:$0xf]
        %v322 = vld [vmem:[%s2 + $0x40] sm:$0xf]
        %v323 = vld [vmem:[%s2 + $0x44] sm:$0xf]
        %v324 = vld [vmem:[%s2 + $0x48] sm:$0xf]
        %v325 = vld [vmem:[%s2 + $0x4c] sm:$0xf]
        %v326 = vld [vmem:[%s2 + $0x50] sm:$0xf]
        %v327 = vld [vmem:[%s2 + $0x54] sm:$0xf]
        %v328 = vld [vmem:[%s2 + $0x58] sm:$0xf]
        %v329 = vld [vmem:[%s2 + $0x5c] sm:$0xf]
        %v330 = vld [vmem:[%s2 + $0x60] sm:$0xf]
        %v331 = vld [vmem:[%s2 + $0x64] sm:$0xf]
        %v332 = vld [vmem:[%s2 + $0x68] sm:$0xf]
        %v333 = vld [vmem:[%s2 + $0x6c] sm:$0xf]
        %v334 = vld [vmem:[%s2 + $0x70] sm:$0xf]
        %v335 = vld [vmem:[%s2 + $0x74] sm:$0xf]
        %v336 = vld [vmem:[%s2 + $0x78] sm:$0xf]
        %v337 = vld [vmem:[%s2 + $0x7c] sm:$0xf]
        %v338 = vld [vmem:[%s3] sm:$0xf]
        %v339 = vld [vmem:[%s3 + $0x4] sm:$0xf]
        %v340 = vld [vmem:[%s3 + $0x8] sm:$0xf]
        %v341 = vld [vmem:[%s3 + $0xc] sm:$0xf]
        %v346 = vunpack.c.l.b16 %v338
        %v347 = vunpack.c.l.b16 %v339
        %v348 = vunpack.c.l.b16 %v340
        %v349 = vunpack.c.l.b16 %v341
        %v350 = vpack.c.b16 %v347, %v346
        %v351 = vpack.c.b16 %v349, %v348
        %vm354 = vcmask 261120
        %v356 = vsel %vm354, %v302, 0
        %v359 = vsel %vm354, %v303, 0
        %v362 = vsel %vm354, %v304, 0
        %v365 = vsel %vm354, %v305, 0
        %367 = vmatpush.bf16.msra.mxu0 0
        %368 = vmatpush.bf16.msra.mxu0 0
        %369 = vmatpush.bf16.msra.mxu0 0
        %370 = vmatpush.bf16.msra.mxu0 0
        %371 = vmatpush.bf16.msra.mxu0 0
        %372 = vmatpush.bf16.msra.mxu0 0
        %373 = vmatpush.bf16.msra.mxu0 %v351
        %374 = vmatpush.bf16.msra.mxu0 %v350
        %375 = vmatmul.bf16.gmra.mxu0 %v356
        %v376 = vpop.f32.mrf.mxu0
        %v377 = vadd.f32 0.0, %v376
        %v378 = vpop.f32.mrf.mxu0
        %v379 = vadd.f32 0.0, %v378
        %380 = vmatmul.bf16.gmra.mxu0 %v359
        %v381 = vpop.f32.mrf.mxu0
        %v382 = vadd.f32 0.0, %v381
        %v383 = vpop.f32.mrf.mxu0
        %v384 = vadd.f32 0.0, %v383
        %385 = vmatmul.bf16.gmra.mxu0 %v362
        %v386 = vpop.f32.mrf.mxu0
        %v387 = vadd.f32 0.0, %v386
        %v388 = vpop.f32.mrf.mxu0
        %v389 = vadd.f32 0.0, %v388
        %390 = vmatmul.bf16.gmra.mxu0 %v365
        %v391 = vpop.f32.mrf.mxu0
        %v392 = vadd.f32 0.0, %v391
        %v393 = vpop.f32.mrf.mxu0
        %v394 = vadd.f32 0.0, %v393
        %395 = vdwg.mxu0
        %v428 = vunpack.c.l.b16 %v306
        %v429 = vunpack.c.l.b16 %v307
        %v430 = vunpack.c.l.b16 %v308
        %v431 = vunpack.c.l.b16 %v309
        %v432 = vunpack.c.l.b16 %v310
        %v433 = vunpack.c.l.b16 %v311
        %v434 = vunpack.c.l.b16 %v312
        %v435 = vunpack.c.l.b16 %v313
        %v436 = vunpack.c.l.b16 %v314
        %v437 = vunpack.c.l.b16 %v315
        %v438 = vunpack.c.l.b16 %v316
        %v439 = vunpack.c.l.b16 %v317
        %v440 = vunpack.c.l.b16 %v318
        %v441 = vunpack.c.l.b16 %v319
        %v442 = vunpack.c.l.b16 %v320
        %v443 = vunpack.c.l.b16 %v321
        %v444 = vunpack.c.l.b16 %v322
        %v445 = vunpack.c.l.b16 %v323
        %v446 = vunpack.c.l.b16 %v324
        %v447 = vunpack.c.l.b16 %v325
        %v448 = vunpack.c.l.b16 %v326
        %v449 = vunpack.c.l.b16 %v327
        %v450 = vunpack.c.l.b16 %v328
        %v451 = vunpack.c.l.b16 %v329
        %v452 = vunpack.c.l.b16 %v330
        %v453 = vunpack.c.l.b16 %v331
        %v454 = vunpack.c.l.b16 %v332
        %v455 = vunpack.c.l.b16 %v333
        %v456 = vunpack.c.l.b16 %v334
        %v457 = vunpack.c.l.b16 %v335
        %v458 = vunpack.c.l.b16 %v336
        %v459 = vunpack.c.l.b16 %v337
        %v460 = vpack.c.b16 %v429, %v428
        %v461 = vpack.c.b16 %v431, %v430
        %v462 = vpack.c.b16 %v433, %v432
        %v463 = vpack.c.b16 %v435, %v434
        %v464 = vpack.c.b16 %v437, %v436
        %v465 = vpack.c.b16 %v439, %v438
        %v466 = vpack.c.b16 %v441, %v440
        %v467 = vpack.c.b16 %v443, %v442
        %v468 = vpack.c.b16 %v445, %v444
        %v469 = vpack.c.b16 %v447, %v446
        %v470 = vpack.c.b16 %v449, %v448
        %v471 = vpack.c.b16 %v451, %v450
        %v472 = vpack.c.b16 %v453, %v452
        %v473 = vpack.c.b16 %v455, %v454
        %v474 = vpack.c.b16 %v457, %v456
        %v475 = vpack.c.b16 %v459, %v458
        %492 = vmatpush.bf16.msra.mxu0 %v467
        %493 = vmatpush.bf16.msra.mxu0 %v466
        %494 = vmatpush.bf16.msra.mxu0 %v465
        %495 = vmatpush.bf16.msra.mxu0 %v464
        %496 = vmatpush.bf16.msra.mxu0 %v463
        %497 = vmatpush.bf16.msra.mxu0 %v462
        %498 = vmatpush.bf16.msra.mxu0 %v461
        %499 = vmatpush.bf16.msra.mxu0 %v460
        %500 = vmatmul.bf16.gmra.mxu0 %v286
        %v501 = vpop.f32.mrf.mxu0
        %v502 = vadd.f32 %v377, %v501
        %v503 = vpop.f32.mrf.mxu0
        %v504 = vadd.f32 %v379, %v503
        %505 = vmatmul.bf16.gmra.mxu0 %v288
        %v506 = vpop.f32.mrf.mxu0
        %v507 = vadd.f32 %v382, %v506
        %v508 = vpop.f32.mrf.mxu0
        %v509 = vadd.f32 %v384, %v508
        %510 = vmatmul.bf16.gmra.mxu0 %v290
        %v511 = vpop.f32.mrf.mxu0
        %v512 = vadd.f32 %v387, %v511
        %v513 = vpop.f32.mrf.mxu0
        %v514 = vadd.f32 %v389, %v513
        %515 = vmatmul.bf16.gmra.mxu0 %v292
        %v516 = vpop.f32.mrf.mxu0
        %v517 = vadd.f32 %v392, %v516
        %v518 = vpop.f32.mrf.mxu0
        %v519 = vadd.f32 %v394, %v518
        %520 = vdwg.mxu0
        %521 = vmatpush.bf16.msra.mxu0 %v475
        %522 = vmatpush.bf16.msra.mxu0 %v474
        %523 = vmatpush.bf16.msra.mxu0 %v473
        %524 = vmatpush.bf16.msra.mxu0 %v472
        %525 = vmatpush.bf16.msra.mxu0 %v471
        %526 = vmatpush.bf16.msra.mxu0 %v470
        %527 = vmatpush.bf16.msra.mxu0 %v469
        %528 = vmatpush.bf16.msra.mxu0 %v468
        %529 = vmatmul.bf16.gmra.mxu0 %v287
        %v530 = vpop.f32.mrf.mxu0
        %v531 = vadd.f32 %v502, %v530
        %v532 = vpop.f32.mrf.mxu0
        %v533 = vadd.f32 %v504, %v532
        %534 = vmatmul.bf16.gmra.mxu0 %v289
        %v535 = vpop.f32.mrf.mxu0
        %v536 = vadd.f32 %v507, %v535
        %v537 = vpop.f32.mrf.mxu0
        %v538 = vadd.f32 %v509, %v537
        %539 = vmatmul.bf16.gmra.mxu0 %v291
        %v540 = vpop.f32.mrf.mxu0
        %v541 = vadd.f32 %v512, %v540
        %v542 = vpop.f32.mrf.mxu0
        %v543 = vadd.f32 %v514, %v542
        %544 = vmatmul.bf16.gmra.mxu0 %v293
        %v545 = vpop.f32.mrf.mxu0
        %v546 = vadd.f32 %v517, %v545
        %v547 = vpop.f32.mrf.mxu0
        %v548 = vadd.f32 %v519, %v547
        %549 = vdwg.mxu0
        %v550 = vmax.f32 %v531, 0.0
        %v551 = vmax.f32 %v533, 0.0
        %v552 = vmax.f32 %v536, 0.0
        %v553 = vmax.f32 %v538, 0.0
        %v554 = vmax.f32 %v541, 0.0
        %v555 = vmax.f32 %v543, 0.0
        %v556 = vmax.f32 %v546, 0.0
        %v557 = vmax.f32 %v548, 0.0
        %v558 = vpack.c.bf16 %v550, %v550
        %v559 = vpack.c.bf16 %v551, %v551
        %v560 = vpack.c.bf16 %v552, %v552
        %v561 = vpack.c.bf16 %v553, %v553
        %v562 = vpack.c.bf16 %v554, %v554
        %v563 = vpack.c.bf16 %v555, %v555
        %v564 = vpack.c.bf16 %v556, %v556
        %v565 = vpack.c.bf16 %v557, %v557
        %vm566 = vcmask 519168
        %567 = vst.msk [vmem:[%s232] sm:$0xf] %vm566, %v558
        %568 = vst.msk [vmem:[%s232 + $0x4] sm:$0xf] %vm566, %v559
        %569 = vst.msk [vmem:[%s232 + $0x8] sm:$0xf] %vm566, %v560
        %570 = vst.msk [vmem:[%s232 + $0xc] sm:$0xf] %vm566, %v561
        %571 = vst.msk [vmem:[%s232 + $0x10] sm:$0xf] %vm566, %v562
        %572 = vst.msk [vmem:[%s232 + $0x14] sm:$0xf] %vm566, %v563
        %573 = vst.msk [vmem:[%s232 + $0x18] sm:$0xf] %vm566, %v564
        %574 = vst.msk [vmem:[%s232 + $0x1c] sm:$0xf] %vm566, %v565
        %s575 = sand.u32 %s117, 1
        %s576 = sand.u32 %s117, 1
        %s577 = smul.addr %s576, 32
        %s578 = scalar_lea.vmem [#allocation2], %s577
        // Predicated region
        $region37: #{sage_gcn_forward.1} parent=35 // pred_check
          %p579 = pneg %p127
        $region38: #{sage_gcn_forward.1} parent=35 // pred_check_branch
          %581 = sbr.rel (%p579) target = $region40
        $region39: #{sage_gcn_forward.1} parent=35 // pred_region
          %s582 = smul.u32 8, %s15
          %s583 = ssub.s32 63, %s582
          %p584 = scmp.lt.s32.totalorder %s583, 8
          %s585 = scalar_select %p584, %s583, 8
          %s586 = smul.u32 4, %s585
          %p587 = scmp.ne.s32.totalorder 0, %s586
          %s588 = smul.addr %s582, 4
          %s589 = scalar_lea.vmem %s4, %s588
          // Predicated region
          $region41: #{sage_gcn_forward.1} parent=39 // pred_check
            %p590 = pneg %p587
          $region42: #{sage_gcn_forward.1} parent=39 // pred_check_branch
            %592 = sbr.rel (%p590) target = $region44
          $region43: #{sage_gcn_forward.1} parent=39 // pred_region
            // Predicated region
            $region45: #{sage_gcn_forward.1} parent=43 // pred_check
              _
            $region46: #{sage_gcn_forward.1} parent=43 // pred_check_branch
              %594 = sbr.rel target = $region48
            $region47: #{sage_gcn_forward.1} parent=43 // pred_region
              // Predicated region
              $region67: #{sage_gcn_forward.1} parent=47 // pred_check
                _
              $region68: #{sage_gcn_forward.1} parent=47 // pred_check_branch
                %658 = sbr.rel (0) target = $region70
              $region69: #{sage_gcn_forward.1} parent=47 // pred_region
                %s660 = ssub.s32 16, 1
                %s661 = sshrl.u32 %s585, 3
                // While loop
                $region71: #{sage_gcn_forward.1} parent=69 // loop_pre_header
                  _
                $region72: #{sage_gcn_forward.1} parent=69 // loop_header
                  %s663 = sphi 0, %s665
                  %p664 = scmp.ge.s32.totalorder %s663, %s661
                  %s668 = sphi 0, %s689
                  %s669 = sphi %s578, %s692
                  %s670 = sphi %s589, %s693
                $region73: #{sage_gcn_forward.1} parent=69 // loop_header_branch
                  %667 = sbr.rel (%p664) target = $region77
                $region74: #{sage_gcn_forward.1} parent=69 // loop_body
                  %v671 = vld [vmem:[%s669] sm:%s660]
                  %672 = vst [vmem:[%s670] sm:%s660] %v671
                  %v673 = vld [vmem:[%s669 + $0x4] sm:%s660]
                  %674 = vst [vmem:[%s670 + $0x4] sm:%s660] %v673
                  %v675 = vld [vmem:[%s669 + $0x8] sm:%s660]
                  %676 = vst [vmem:[%s670 + $0x8] sm:%s660] %v675
                  %v677 = vld [vmem:[%s669 + $0xc] sm:%s660]
                  %678 = vst [vmem:[%s670 + $0xc] sm:%s660] %v677
                  %v679 = vld [vmem:[%s669 + $0x10] sm:%s660]
                  %680 = vst [vmem:[%s670 + $0x10] sm:%s660] %v679
                  %v681 = vld [vmem:[%s669 + $0x14] sm:%s660]
                  %682 = vst [vmem:[%s670 + $0x14] sm:%s660] %v681
                  %v683 = vld [vmem:[%s669 + $0x18] sm:%s660]
                  %684 = vst [vmem:[%s670 + $0x18] sm:%s660] %v683
                  %v685 = vld [vmem:[%s669 + $0x1c] sm:%s660]
                  %686 = vst [vmem:[%s670 + $0x1c] sm:%s660] %v685
                  %s687 = sadd.s32 1, %s668
                  %p688 = scmp.ge.s32.totalorder %s687, %s661
                  %s689 = scalar_select %p688, 0, %s687
                  %s690 = smul.u32 %s689, 32
                  %s691 = smul.u32 %s689, 32
                  %s692 = scalar_lea.vmem %s578, %s690 [#allocation2]
                  %s693 = scalar_lea.vmem %s589, %s691
                $region75: #{sage_gcn_forward.1} parent=69 // loop_footer
                  %s665 = sadd.s32 %s663, 1
                $region76: #{sage_gcn_forward.1} parent=69 // loop_footer_branch
                  %662 = sbr.rel target = $region72
                $region77: #{sage_gcn_forward.1} parent=69 // loop_exit
                  _
                %s694 = sshrl.u32 %s585, 3
                %s695 = sand.u32 %s585, 7
                %s696 = smul.u32 %s694, 8
                %s697 = smul.u32 4, %s696
                %s698 = scalar_lea.vmem %s578, %s697 [#allocation2]
                %s699 = smul.u32 4, %s696
                %s700 = scalar_lea.vmem %s589, %s699
                // While loop
                $region78: #{sage_gcn_forward.1} parent=69 // loop_pre_header
                  _
                $region79: #{sage_gcn_forward.1} parent=69 // loop_header
                  %s702 = sphi 0, %s704
                  %p703 = scmp.ge.s32.totalorder %s702, %s695
                  %s707 = sphi 0, %s714
                  %s708 = sphi %s698, %s717
                  %s709 = sphi %s700, %s718
                $region80: #{sage_gcn_forward.1} parent=69 // loop_header_branch
                  %706 = sbr.rel (%p703) target = $region84
                $region81: #{sage_gcn_forward.1} parent=69 // loop_body
                  %v710 = vld [vmem:[%s708] sm:%s660]
                  %711 = vst [vmem:[%s709] sm:%s660] %v710
                  %s712 = sadd.s32 1, %s707
                  %p713 = scmp.ge.s32.totalorder %s712, %s695
                  %s714 = scalar_select %p713, 0, %s712
                  %s715 = smul.u32 %s714, 4
                  %s716 = smul.u32 %s714, 4
                  %s717 = scalar_lea.vmem %s698, %s715 [#allocation2]
                  %s718 = scalar_lea.vmem %s700, %s716
                $region82: #{sage_gcn_forward.1} parent=69 // loop_footer
                  %s704 = sadd.s32 %s702, 1
                $region83: #{sage_gcn_forward.1} parent=69 // loop_footer_branch
                  %701 = sbr.rel target = $region79
                $region84: #{sage_gcn_forward.1} parent=69 // loop_exit
                  _
              $region70: #{sage_gcn_forward.1} parent=47 // pred_fallthru
                _
            $region48: #{sage_gcn_forward.1} parent=43 // pred_fallthru
              _
            // Predicated region
            $region49: #{sage_gcn_forward.1} parent=43 // pred_check
              _
            $region50: #{sage_gcn_forward.1} parent=43 // pred_check_branch
              %596 = sbr.rel (0) target = $region52
            $region51: #{sage_gcn_forward.1} parent=43 // pred_region
              %s598 = ssub.s32 16, 1
              %s599 = sshrl.u32 %s585, 3
              // While loop
              $region53: #{sage_gcn_forward.1} parent=51 // loop_pre_header
                _
              $region54: #{sage_gcn_forward.1} parent=51 // loop_header
                %s601 = sphi 0, %s603
                %p602 = scmp.ge.s32.totalorder %s601, %s599
                %s606 = sphi 0, %s627
                %s607 = sphi %s578, %s630
                %s608 = sphi %s589, %s631
              $region55: #{sage_gcn_forward.1} parent=51 // loop_header_branch
                %605 = sbr.rel (%p602) target = $region59
              $region56: #{sage_gcn_forward.1} parent=51 // loop_body
                %v609 = vld [vmem:[%s607] sm:%s598]
                %610 = vst [vmem:[%s608] sm:%s598] %v609
                %v611 = vld [vmem:[%s607 + $0x4] sm:%s598]
                %612 = vst [vmem:[%s608 + $0x4] sm:%s598] %v611
                %v613 = vld [vmem:[%s607 + $0x8] sm:%s598]
                %614 = vst [vmem:[%s608 + $0x8] sm:%s598] %v613
                %v615 = vld [vmem:[%s607 + $0xc] sm:%s598]
                %616 = vst [vmem:[%s608 + $0xc] sm:%s598] %v615
                %v617 = vld [vmem:[%s607 + $0x10] sm:%s598]
                %618 = vst [vmem:[%s608 + $0x10] sm:%s598] %v617
                %v619 = vld [vmem:[%s607 + $0x14] sm:%s598]
                %620 = vst [vmem:[%s608 + $0x14] sm:%s598] %v619
                %v621 = vld [vmem:[%s607 + $0x18] sm:%s598]
                %622 = vst [vmem:[%s608 + $0x18] sm:%s598] %v621
                %v623 = vld [vmem:[%s607 + $0x1c] sm:%s598]
                %624 = vst [vmem:[%s608 + $0x1c] sm:%s598] %v623
                %s625 = sadd.s32 1, %s606
                %p626 = scmp.ge.s32.totalorder %s625, %s599
                %s627 = scalar_select %p626, 0, %s625
                %s628 = smul.u32 %s627, 32
                %s629 = smul.u32 %s627, 32
                %s630 = scalar_lea.vmem %s578, %s628 [#allocation2]
                %s631 = scalar_lea.vmem %s589, %s629
              $region57: #{sage_gcn_forward.1} parent=51 // loop_footer
                %s603 = sadd.s32 %s601, 1
              $region58: #{sage_gcn_forward.1} parent=51 // loop_footer_branch
                %600 = sbr.rel target = $region54
              $region59: #{sage_gcn_forward.1} parent=51 // loop_exit
                _
              %s632 = sshrl.u32 %s585, 3
              %s633 = sand.u32 %s585, 7
              %s634 = smul.u32 %s632, 8
              %s635 = smul.u32 4, %s634
              %s636 = scalar_lea.vmem %s578, %s635 [#allocation2]
              %s637 = smul.u32 4, %s634
              %s638 = scalar_lea.vmem %s589, %s637
              // While loop
              $region60: #{sage_gcn_forward.1} parent=51 // loop_pre_header
                _
              $region61: #{sage_gcn_forward.1} parent=51 // loop_header
                %s640 = sphi 0, %s642
                %p641 = scmp.ge.s32.totalorder %s640, %s633
                %s645 = sphi 0, %s652
                %s646 = sphi %s636, %s655
                %s647 = sphi %s638, %s656
              $region62: #{sage_gcn_forward.1} parent=51 // loop_header_branch
                %644 = sbr.rel (%p641) target = $region66
              $region63: #{sage_gcn_forward.1} parent=51 // loop_body
                %v648 = vld [vmem:[%s646] sm:%s598]
                %649 = vst [vmem:[%s647] sm:%s598] %v648
                %s650 = sadd.s32 1, %s645
                %p651 = scmp.ge.s32.totalorder %s650, %s633
                %s652 = scalar_select %p651, 0, %s650
                %s653 = smul.u32 %s652, 4
                %s654 = smul.u32 %s652, 4
                %s655 = scalar_lea.vmem %s636, %s653 [#allocation2]
                %s656 = scalar_lea.vmem %s638, %s654
              $region64: #{sage_gcn_forward.1} parent=51 // loop_footer
                %s642 = sadd.s32 %s640, 1
              $region65: #{sage_gcn_forward.1} parent=51 // loop_footer_branch
                %639 = sbr.rel target = $region61
              $region66: #{sage_gcn_forward.1} parent=51 // loop_exit
                _
            $region52: #{sage_gcn_forward.1} parent=43 // pred_fallthru
              _
          $region44: #{sage_gcn_forward.1} parent=39 // pred_fallthru
            _
          %719 = vnop
        $region40: #{sage_gcn_forward.1} parent=35 // pred_fallthru
          _
      $region36: #{sage_gcn_forward.1} parent=5 // pred_fallthru
        _
      %p720 = scmp.le.s32.totalorder 2, %s10
      // Predicated region
      $region85: #{sage_gcn_forward.1} parent=5 // pred_check
        %p721 = pneg %p720
      $region86: #{sage_gcn_forward.1} parent=5 // pred_check_branch
        %723 = sbr.rel (%p721) target = $region88
      $region87: #{sage_gcn_forward.1} parent=5 // pred_region
        %s724 = ssub.s32 %s10, 2
        // Predicated region
        $region89: #{sage_gcn_forward.1} parent=87 // pred_check
          %p725 = pneg %p133
        $region90: #{sage_gcn_forward.1} parent=87 // pred_check_branch
          %727 = sbr.rel (%p725) target = $region92
        $region91: #{sage_gcn_forward.1} parent=87 // pred_region
          %s728 = sand.u32 %s118, 1
          %s729 = sand.u32 %s118, 1
          %s730 = smul.addr %s729, 32
          %s731 = scalar_lea.vmem [#allocation2], %s730
        $region92: #{sage_gcn_forward.1} parent=87 // pred_fallthru
          _
      $region88: #{sage_gcn_forward.1} parent=5 // pred_fallthru
        _
    $region6: #{sage_gcn_forward.1} parent=1 // loop_footer
      %s14 = sadd.s32 1, %s10
    $region7: #{sage_gcn_forward.1} parent=1 // loop_footer_branch
      %9 = sbr.rel target = $region3
    $region8: #{sage_gcn_forward.1} parent=1 // loop_exit
      _

</llo_original>
